<compile_context>
chip_gen: v6e
topology: v6e:2x2x1
jax: 0.10.0
libtpu: 0.0.40
codegen_flags: <defaults>
</compile_context>

<pallas_src>
import jax
import jax.numpy as jnp
from jax.experimental import pallas as pl
from jax.experimental.pallas import tpu as pltpu


def _mlp_kernel(xt_ref, w1_ref, b1_ref, w2_ref, b2_ref, w3_ref, b3_ref, o_ref):
    # All activations are "transposed": lane dim = batch tile (dense), sublane
    # dim = features.  bf16 MXU operands, f32 accumulation / bias / ReLU.
    xt = xt_ref[...]                                                   # (D, bm) bf16
    h1 = jnp.dot(w1_ref[...], xt, preferred_element_type=jnp.float32)  # (64, bm) f32
    h1 = jnp.maximum(h1 + b1_ref[...], 0.0)                            # ReLU, f32 VPU
    h2 = jnp.dot(w2_ref[...], h1.astype(w2_ref.dtype),
                 preferred_element_type=jnp.float32)                   # (32, bm) f32
    h2 = jnp.maximum(h2 + b2_ref[...], 0.0)                            # ReLU, f32 VPU
    # Linear(32, 1): broadcast-mul (VPU) + sublane reduce (XLU) -> (1, bm),
    # lane-dense output row.  No N=1 matmul, no lane-sparse store.
    out = jnp.sum(h2 * w3_ref[...], axis=0, keepdims=True) + b3_ref[...]
    o_ref[...] = out.astype(o_ref.dtype)


def _round_up(n, m):
    return ((n + m - 1) // m) * m


def mlp_forward(x, params, *, block_m=4096):
    """Forward pass.  x: [B, input_size] float32 -> [B, 1] float32."""
    w1, b1 = params["w1"], params["b1"]
    w2, b2 = params["w2"], params["b2"]
    w3, b3 = params["w3"], params["b3"]
    B, D = x.shape
    H1 = w1.shape[0]          # 64
    H2 = w2.shape[0]          # 32

    # Batch-on-lanes: kernel consumes x^T (D, B) in the MXU-operand dtype.
    # (A real pipeline would hand x over feature-major / bf16 already, making
    # this transpose+cast copy disappear upstream.)
    xt = x.T.astype(w1.dtype)

    # Batch tile: lane-dense (multiple of 128), large (default 4096) to
    # amortize per-grid-step overhead, but capped so there are >= 2 grid steps
    # once B > 256 — otherwise one of v7x's two TensorCores would sit idle.
    if B <= 256:
        bm = B                                            # single tile == full lane extent
    else:
        bm = min(block_m, _round_up(pl.cdiv(B, 2), 128))
    grid = (pl.cdiv(B, bm),)                              # remainder tile is masked by Pallas

    def pinned(shape):
        # Params: same block every grid step -> fetched once, VMEM-resident.
        return pl.BlockSpec(shape, lambda i: (0, 0))

    # Per-tile VMEM footprint with generous headroom; clamp to a range safe on
    # every generation (v7x has only 64 MiB physical VMEM).
    op_bytes = w1.dtype.itemsize
    tile_bytes = bm * (2 * D * op_bytes        # x^T double buffer
                       + 2 * 8 * 4             # (1, bm) out block (8-sublane padded), double-buffered
                       + (H1 + H2) * 4)        # f32 h1^T / h2^T intermediates
    vmem_limit = int(min(max(4 * tile_bytes, 16 * 2**20), 32 * 2**20))

    flops = 2 * B * (D * H1 + H1 * H2 + H2)
    bytes_accessed = (B * D * op_bytes + B * 4
                      + D * H1 * op_bytes + H1 * 4
                      + H1 * H2 * op_bytes + H2 * 4
                      + H2 * 4 + 4)

    out = pl.pallas_call(
        _mlp_kernel,
        out_shape=jax.ShapeDtypeStruct((1, B), jnp.float32),
        grid=grid,
        in_specs=[
            pl.BlockSpec((D, bm), lambda i: (0, i)),   # x^T: streamed per batch tile
            pinned((H1, D)),                           # W1 (torch [out, in] layout)
            pinned((H1, 1)),                           # b1 (column -> lane broadcast)
            pinned((H2, H1)),                          # W2
            pinned((H2, 1)),                           # b2
            pinned((H2, 1)),                           # w3 (mlp_head weight, as a column)
            pinned((1, 1)),                            # b3
        ],
        out_specs=pl.BlockSpec((1, bm), lambda i: (0, i)),   # lane-dense output row
        compiler_params=pltpu.CompilerParams(
            dimension_semantics=("parallel",),         # shards batch tiles across v7x TCs
            vmem_limit_bytes=vmem_limit,
        ),
        cost_estimate=pl.CostEstimate(
            flops=flops, transcendentals=0, bytes_accessed=bytes_accessed),
    )(xt, w1, b1, w2, b2, w3, b3)

    # (1, B) row -> (B, 1) column (trivial reshape of a contiguous vector).
    return out.reshape(B, 1)


def init_params(input_size, key, *, operand_dtype=jnp.bfloat16):
    """torch.nn.Linear-style init (uniform +-1/sqrt(fan_in)).

    W1/W2 kept in torch [out, in] layout (exactly what the transposed kernel
    needs) and stored in the MXU-operand dtype (bf16 by default); biases and
    the tiny head stay f32.  w3 is stored as a (32, 1) column for the
    broadcast-mul + sublane-reduce head; b3 is (1, 1).
    """
    ks = jax.random.split(key, 6)

    def uniform(k, shape, fan_in, dtype=jnp.float32):
        bound = 1.0 / (float(fan_in) ** 0.5)
        return jax.random.uniform(k, shape, jnp.float32, -bound, bound).astype(dtype)

    w1 = uniform(ks[0], (64, input_size), input_size, operand_dtype)
    b1 = uniform(ks[1], (64, 1), input_size)
    w2 = uniform(ks[2], (32, 64), 64, operand_dtype)
    b2 = uniform(ks[3], (32, 1), 64)
    w3 = uniform(ks[4], (32, 1), 32)
    b3 = uniform(ks[5], (1, 1), 32)
    return {"w1": w1, "b1": b1, "w2": w2, "b2": b2, "w3": w3, "b3": b3}


def mlp_reference(x, params):
    """Pure-JAX reference with the same operand-precision policy as the kernel
    (bf16 MXU operands, f32 accumulation / bias / ReLU)."""
    xt = x.T.astype(params["w1"].dtype)
    h1 = jnp.maximum(
        jnp.dot(params["w1"], xt, preferred_element_type=jnp.float32) + params["b1"], 0.0)
    h2 = jnp.maximum(
        jnp.dot(params["w2"], h1.astype(params["w2"].dtype),
                preferred_element_type=jnp.float32) + params["b2"], 0.0)
    out = jnp.sum(h2 * params["w3"], axis=0, keepdims=True) + params["b3"]
    return out.reshape(-1, 1)


if __name__ == "__main__":
    key = jax.random.PRNGKey(0)
    k_p, k_x1, k_x2 = jax.random.split(key, 3)

    input_size = 16
    params = init_params(input_size, k_p)

    # Small batch (not a multiple of 8/128): single-tile path.
    x1 = jax.random.normal(k_x1, (10, input_size), jnp.float32)
    out1 = jax.block_until_ready(mlp_forward(x1, params))
    ref1 = mlp_reference(x1, params)
    assert out1.shape == (10, 1)
    assert jnp.allclose(out1, ref1, atol=2e-3, rtol=2e-3)

    # Larger batch: >= 2 grid steps (engages both v7x TensorCores) and a masked
    # epilogue tile (300 = 256 + 44) with no wrapper-side padding copy.
    x2 = jax.random.normal(k_x2, (300, input_size), jnp.float32)
    out2 = jax.block_until_ready(mlp_forward(x2, params))
    ref2 = mlp_reference(x2, params)
    assert out2.shape == (300, 1)
    assert jnp.allclose(out2, ref2, atol=2e-3, rtol=2e-3)

    print("KERNEL_OK")
</pallas_src>

<mosaic_0001>
module attributes {stable_mosaic.version = 11 : i64} {
  func.func @_mlp_kernel(%arg0: i32, %arg1: memref<16x10xbf16, #tpu.memory_space<vmem>>, %arg2: memref<64x16xbf16, #tpu.memory_space<vmem>>, %arg3: memref<64x1xf32, #tpu.memory_space<vmem>>, %arg4: memref<32x64xbf16, #tpu.memory_space<vmem>>, %arg5: memref<32x1xf32, #tpu.memory_space<vmem>>, %arg6: memref<32x1xf32, #tpu.memory_space<vmem>>, %arg7: memref<1x1xf32, #tpu.memory_space<vmem>>, %arg8: memref<1x10xf32, #tpu.memory_space<vmem>>) attributes {dimension_semantics = [#tpu.dimension_semantics<parallel>], iteration_bounds = array<i64: 1>, scalar_prefetch = 0 : i64, scratch_operands = 0 : i64, tpu.core_type = #tpu.core_type<tc>, window_params = [{transform_indices = @transform_0, window_bounds = array<i64: 16, 10>}, {pipeline_mode = #tpu.pipeline_mode<synchronous>, transform_indices = @transform_1, window_bounds = array<i64: 64, 16>}, {pipeline_mode = #tpu.pipeline_mode<synchronous>, transform_indices = @transform_2, window_bounds = array<i64: 64, 1>}, {pipeline_mode = #tpu.pipeline_mode<synchronous>, transform_indices = @transform_3, window_bounds = array<i64: 32, 64>}, {pipeline_mode = #tpu.pipeline_mode<synchronous>, transform_indices = @transform_4, window_bounds = array<i64: 32, 1>}, {pipeline_mode = #tpu.pipeline_mode<synchronous>, transform_indices = @transform_5, window_bounds = array<i64: 32, 1>}, {pipeline_mode = #tpu.pipeline_mode<synchronous>, transform_indices = @transform_6, window_bounds = array<i64: 1, 1>}, {transform_indices = @transform_7, window_bounds = array<i64: 1, 10>}]} {
    %c0 = arith.constant 0 : index
    %c0_0 = arith.constant 0 : index
    %0 = vector.load %arg1[%c0, %c0_0] : memref<16x10xbf16, #tpu.memory_space<vmem>>, vector<16x10xbf16>
    %c0_1 = arith.constant 0 : index
    %c0_2 = arith.constant 0 : index
    %1 = vector.load %arg2[%c0_1, %c0_2] : memref<64x16xbf16, #tpu.memory_space<vmem>>, vector<64x16xbf16>
    %cst = arith.constant dense<0.000000e+00> : vector<64x10xf32>
    %2 = tpu.matmul %1, %0, %cst {dimension_numbers = #tpu.dot_dimension_numbers<[1], [0], [0], [1], [0, 0, 1, 1], [], []>} : vector<64x16xbf16>, vector<16x10xbf16>, vector<64x10xf32> -> vector<64x10xf32>
    %c0_3 = arith.constant 0 : index
    %c0_4 = arith.constant 0 : index
    %3 = vector.load %arg3[%c0_3, %c0_4] : memref<64x1xf32, #tpu.memory_space<vmem>>, vector<64x1xf32>
    %4 = vector.broadcast %3 : vector<64x1xf32> to vector<64x10xf32>
    %5 = arith.addf %2, %4 : vector<64x10xf32>
    %cst_5 = arith.constant 0.000000e+00 : f32
    %6 = vector.broadcast %cst_5 : f32 to vector<64x10xf32>
    %7 = arith.maximumf %5, %6 : vector<64x10xf32>
    %c0_6 = arith.constant 0 : index
    %c0_7 = arith.constant 0 : index
    %8 = vector.load %arg4[%c0_6, %c0_7] : memref<32x64xbf16, #tpu.memory_space<vmem>>, vector<32x64xbf16>
    %9 = arith.truncf %7 : vector<64x10xf32> to vector<64x10xbf16>
    %cst_8 = arith.constant dense<0.000000e+00> : vector<32x10xf32>
    %10 = tpu.matmul %8, %9, %cst_8 {dimension_numbers = #tpu.dot_dimension_numbers<[1], [0], [0], [1], [0, 0, 1, 1], [], []>} : vector<32x64xbf16>, vector<64x10xbf16>, vector<32x10xf32> -> vector<32x10xf32>
    %c0_9 = arith.constant 0 : index
    %c0_10 = arith.constant 0 : index
    %11 = vector.load %arg5[%c0_9, %c0_10] : memref<32x1xf32, #tpu.memory_space<vmem>>, vector<32x1xf32>
    %12 = vector.broadcast %11 : vector<32x1xf32> to vector<32x10xf32>
    %13 = arith.addf %10, %12 : vector<32x10xf32>
    %cst_11 = arith.constant 0.000000e+00 : f32
    %14 = vector.broadcast %cst_11 : f32 to vector<32x10xf32>
    %15 = arith.maximumf %13, %14 : vector<32x10xf32>
    %c0_12 = arith.constant 0 : index
    %c0_13 = arith.constant 0 : index
    %16 = vector.load %arg6[%c0_12, %c0_13] : memref<32x1xf32, #tpu.memory_space<vmem>>, vector<32x1xf32>
    %17 = vector.broadcast %16 : vector<32x1xf32> to vector<32x10xf32>
    %18 = arith.mulf %15, %17 : vector<32x10xf32>
    %cst_14 = arith.constant dense<0.000000e+00> : vector<10xf32>
    %19 = vector.multi_reduction <add>, %18, %cst_14 [0] : vector<32x10xf32> to vector<10xf32>
    %20 = vector.shape_cast %19 : vector<10xf32> to vector<1x10xf32>
    %c0_15 = arith.constant 0 : index
    %c0_16 = arith.constant 0 : index
    %21 = vector.load %arg7[%c0_15, %c0_16] : memref<1x1xf32, #tpu.memory_space<vmem>>, vector<1x1xf32>
    %22 = vector.broadcast %21 : vector<1x1xf32> to vector<1x10xf32>
    %23 = arith.addf %20, %22 : vector<1x10xf32>
    %c0_17 = arith.constant 0 : index
    %c0_18 = arith.constant 0 : index
    %24 = vector.load %arg8[%c0_17, %c0_18] : memref<1x10xf32, #tpu.memory_space<vmem>>, vector<1x10xf32>
    tpu.vector_store %arg8[%c0_17, %c0_18], %23 {strides = array<i32>} : memref<1x10xf32, #tpu.memory_space<vmem>>, vector<1x10xf32>,
    return
  }
  func.func @transform_0(%arg0: i32) -> (i32, i32) {
    %c0_i32 = arith.constant 0 : i32
    %c0_i32_0 = arith.constant 0 : i32
    return %c0_i32, %arg0 : i32, i32
  }
  func.func @transform_1(%arg0: i32) -> (i32, i32) {
    %c0_i32 = arith.constant 0 : i32
    %c0_i32_0 = arith.constant 0 : i32
    %c0_i32_1 = arith.constant 0 : i32
    return %c0_i32, %c0_i32_0 : i32, i32
  }
  func.func @transform_2(%arg0: i32) -> (i32, i32) {
    %c0_i32 = arith.constant 0 : i32
    %c0_i32_0 = arith.constant 0 : i32
    %c0_i32_1 = arith.constant 0 : i32
    return %c0_i32, %c0_i32_0 : i32, i32
  }
  func.func @transform_3(%arg0: i32) -> (i32, i32) {
    %c0_i32 = arith.constant 0 : i32
    %c0_i32_0 = arith.constant 0 : i32
    %c0_i32_1 = arith.constant 0 : i32
    return %c0_i32, %c0_i32_0 : i32, i32
  }
  func.func @transform_4(%arg0: i32) -> (i32, i32) {
    %c0_i32 = arith.constant 0 : i32
    %c0_i32_0 = arith.constant 0 : i32
    %c0_i32_1 = arith.constant 0 : i32
    return %c0_i32, %c0_i32_0 : i32, i32
  }
  func.func @transform_5(%arg0: i32) -> (i32, i32) {
    %c0_i32 = arith.constant 0 : i32
    %c0_i32_0 = arith.constant 0 : i32
    %c0_i32_1 = arith.constant 0 : i32
    return %c0_i32, %c0_i32_0 : i32, i32
  }
  func.func @transform_6(%arg0: i32) -> (i32, i32) {
    %c0_i32 = arith.constant 0 : i32
    %c0_i32_0 = arith.constant 0 : i32
    %c0_i32_1 = arith.constant 0 : i32
    return %c0_i32, %c0_i32_0 : i32, i32
  }
  func.func @transform_7(%arg0: i32) -> (i32, i32) {
    %c0_i32 = arith.constant 0 : i32
    %c0_i32_0 = arith.constant 0 : i32
    return %c0_i32, %arg0 : i32, i32
  }
}

</mosaic_0001>

<llo_original>
// kernel: tpu_custom_call.1
$region0: #{tpu_custom_call.1}
  #allocation0 [shape = 'u32[]', space=smem, size = 0x4, offset = 0x4, fixed_abs, tag = 'smem constant byte address 0x4 - core index']
  #allocation1 [shape = 'u32[144,128]{1,0:T(1,128)}', space=vmem, size = 0x12000, scoped, tag = 'internal scratch']
  #allocation2 [shape = 'f32[1,1]{1,0:T(1,128)S(1)}', space=vmem, size = 0x200, scoped, tag = 'scoped memory for tpu_custom_call.1']
  %s0 = inlined_call_operand.vmem [shape: bf16[16,10], index: 0, kind: input, shape index: {}]
  %s1 = inlined_call_operand.vmem [shape: bf16[64,16], index: 1, kind: input, shape index: {}]
  %s2 = inlined_call_operand.vmem [shape: f32[64,1], index: 2, kind: input, shape index: {}]
  %s3 = inlined_call_operand.vmem [shape: bf16[32,64], index: 3, kind: input, shape index: {}]
  %s4 = inlined_call_operand.vmem [shape: f32[32,1], index: 4, kind: input, shape index: {}]
  %s5 = inlined_call_operand.vmem [shape: f32[32,1], index: 5, kind: input, shape index: {}]
  %s6 = inlined_call_operand.<no memory space> [shape: f32[1,1], index: 6, kind: input, shape index: {}]
  %s7 = inlined_call_operand.hbm [shape: f32[1,10], index: 7, kind: output, shape index: {}]
  %s8 = sld [smem:[#allocation0]]
  $region38: #{tpu_custom_call.1} parent=0
    _
  %s10 = ssub.s32 1, %s8
  %s11 = scalar_select 0, %s10, %s8
  %v12 = vstv %s6
  %13 = vst [vmem:[#allocation2] sm:$0x1] %v12
  $region1: #{tpu_custom_call.1} parent=0
    #allocation3 [shape = 'u8[512]{0}', space=vmem, size = 0x400, scoped, tag = 'output window, operand 0, single buffered']
    #allocation4 [shape = 's32[1]{0}', space=sflag, size = 0x4, scoped, tag = 'scoped memory for tpu_custom_call.1']
    %14 = vsyncpa [#allocation4], 0
    // Predicated region
    $region2: #{tpu_custom_call.1} parent=1 // pred_check
      _
    $region3: #{tpu_custom_call.1} parent=1 // pred_check_branch
      %16 = sbr.rel (0) target = $region5
    $region4: #{tpu_custom_call.1} parent=1 // pred_region
      _
    $region5: #{tpu_custom_call.1} parent=1 // pred_fallthru
      _
    // Predicated region
    $region6: #{tpu_custom_call.1} parent=1 // pred_check
      _
    $region7: #{tpu_custom_call.1} parent=1 // pred_check_branch
      %18 = sbr.rel (0) target = $region9
    $region8: #{tpu_custom_call.1} parent=1 // pred_region
      _
    $region9: #{tpu_custom_call.1} parent=1 // pred_fallthru
      _
    // Predicated region
    $region10: #{tpu_custom_call.1} parent=1 // pred_check
      _
    $region11: #{tpu_custom_call.1} parent=1 // pred_check_branch
      %20 = sbr.rel (0) target = $region13
    $region12: #{tpu_custom_call.1} parent=1 // pred_region
      _
    $region13: #{tpu_custom_call.1} parent=1 // pred_fallthru
      _
    // Predicated region
    $region14: #{tpu_custom_call.1} parent=1 // pred_check
      _
    $region15: #{tpu_custom_call.1} parent=1 // pred_check_branch
      %22 = sbr.rel (0) target = $region17
    $region16: #{tpu_custom_call.1} parent=1 // pred_region
      _
    $region17: #{tpu_custom_call.1} parent=1 // pred_fallthru
      _
    // Predicated region
    $region18: #{tpu_custom_call.1} parent=1 // pred_check
      _
    $region19: #{tpu_custom_call.1} parent=1 // pred_check_branch
      %24 = sbr.rel (0) target = $region21
    $region20: #{tpu_custom_call.1} parent=1 // pred_region
      _
    $region21: #{tpu_custom_call.1} parent=1 // pred_fallthru
      _
    // Predicated region
    $region22: #{tpu_custom_call.1} parent=1 // pred_check
      _
    $region23: #{tpu_custom_call.1} parent=1 // pred_check_branch
      %26 = sbr.rel (0) target = $region25
    $region24: #{tpu_custom_call.1} parent=1 // pred_region
      _
    $region25: #{tpu_custom_call.1} parent=1 // pred_fallthru
      _
    // Predicated region
    $region26: #{tpu_custom_call.1} parent=1 // pred_check
      _
    $region27: #{tpu_custom_call.1} parent=1 // pred_check_branch
      %28 = sbr.rel (0) target = $region29
    $region28: #{tpu_custom_call.1} parent=1 // pred_region
      _
    $region29: #{tpu_custom_call.1} parent=1 // pred_fallthru
      _
    %v30 = vld [vmem:[%s0] sm:$0xf]
    %v31 = vld [vmem:[%s0 + $0x4] sm:$0xf]
    %v32 = vld [vmem:[%s1] sm:$0xf]
    %v33 = vld [vmem:[%s1 + $0x4] sm:$0xf]
    %v34 = vld [vmem:[%s1 + $0x8] sm:$0xf]
    %v35 = vld [vmem:[%s1 + $0xc] sm:$0xf]
    %v36 = vld [vmem:[%s1 + $0x10] sm:$0xf]
    %v37 = vld [vmem:[%s1 + $0x14] sm:$0xf]
    %v38 = vld [vmem:[%s1 + $0x18] sm:$0xf]
    %v39 = vld [vmem:[%s1 + $0x1c] sm:$0xf]
    %v40 = vld [vmem:[%s2] sm:$0xff]
    %v41 = vld [vmem:[%s2 + $0x8] sm:$0xff]
    %v42 = vld [vmem:[%s2 + $0x10] sm:$0xff]
    %v43 = vld [vmem:[%s2 + $0x18] sm:$0xff]
    %v44 = vld [vmem:[%s2 + $0x20] sm:$0xff]
    %v45 = vld [vmem:[%s2 + $0x28] sm:$0xff]
    %v46 = vld [vmem:[%s2 + $0x30] sm:$0xff]
    %v47 = vld [vmem:[%s2 + $0x38] sm:$0xff]
    %49 = vset.pattern.permute.xlu0 0
    %50 = vperm.xlu0 %49, %v40
    %v51 = vpop.permute.xlu0 %50
    %54 = vset.pattern.permute.xlu0 0
    %55 = vperm.xlu0 %54, %v41
    %v56 = vpop.permute.xlu0 %55
    %59 = vset.pattern.permute.xlu0 0
    %60 = vperm.xlu0 %59, %v42
    %v61 = vpop.permute.xlu0 %60
    %64 = vset.pattern.permute.xlu0 0
    %65 = vperm.xlu0 %64, %v43
    %v66 = vpop.permute.xlu0 %65
    %69 = vset.pattern.permute.xlu0 0
    %70 = vperm.xlu0 %69, %v44
    %v71 = vpop.permute.xlu0 %70
    %74 = vset.pattern.permute.xlu0 0
    %75 = vperm.xlu0 %74, %v45
    %v76 = vpop.permute.xlu0 %75
    %79 = vset.pattern.permute.xlu0 0
    %80 = vperm.xlu0 %79, %v46
    %v81 = vpop.permute.xlu0 %80
    %84 = vset.pattern.permute.xlu0 0
    %85 = vperm.xlu0 %84, %v47
    %v86 = vpop.permute.xlu0 %85
    %v96 = vunpack.c.l.b16 %v32
    %v97 = vunpack.c.l.b16 %v33
    %v98 = vunpack.c.l.b16 %v34
    %v99 = vunpack.c.l.b16 %v35
    %v100 = vunpack.c.l.b16 %v36
    %v101 = vunpack.c.l.b16 %v37
    %v102 = vunpack.c.l.b16 %v38
    %v103 = vunpack.c.l.b16 %v39
    %v104 = vpack.c.b16 %v97, %v96
    %v105 = vpack.c.b16 %v99, %v98
    %v106 = vpack.c.b16 %v101, %v100
    %v107 = vpack.c.b16 %v103, %v102
    %v110 = vunpack.c.l.b16 %v30
    %v111 = vunpack.c.l.b16 %v31
    %v112 = vpack.c.b16 %v111, %v110
    %vm114 = vcmask 130048
    %v116 = vsel %vm114, %v104, 0
    %v119 = vsel %vm114, %v105, 0
    %v122 = vsel %vm114, %v106, 0
    %v125 = vsel %vm114, %v107, 0
    %127 = vmatprep.subr.bf16.mxu0 0
    %128 = vmatpush1.bf16.msra.mxu0 0
    %129 = vmatprep.subr.bf16.mxu0 0
    %130 = vmatpush1.bf16.msra.mxu0 0
    %131 = vmatprep.subr.bf16.mxu0 0
    %132 = vmatpush1.bf16.msra.mxu0 0
    %133 = vmatprep.subr.bf16.mxu0 0
    %134 = vmatpush1.bf16.msra.mxu0 0
    %135 = vmatprep.subr.bf16.mxu0 0
    %136 = vmatpush1.bf16.msra.mxu0 0
    %137 = vmatprep.subr.bf16.mxu0 0
    %138 = vmatpush1.bf16.msra.mxu0 0
    %139 = vmatprep.subr.bf16.mxu0 0
    %140 = vmatpush1.bf16.msra.mxu0 0
    %141 = vmatprep.subr.bf16.mxu0 0
    %142 = vmatpush1.bf16.msra.mxu0 %v112
    %143 = vmatprep.subr.bf16.mxu0 0
    %144 = vmatpush2.bf16.msra.mxu0 0
    %145 = vmatprep.subr.bf16.mxu0 0
    %146 = vmatpush2.bf16.msra.mxu0 0
    %147 = vmatprep.subr.bf16.mxu0 0
    %148 = vmatpush2.bf16.msra.mxu0 0
    %149 = vmatprep.subr.bf16.mxu0 0
    %150 = vmatpush2.bf16.msra.mxu0 0
    %151 = vmatprep.subr.bf16.mxu0 0
    %152 = vmatpush2.bf16.msra.mxu0 0
    %153 = vmatprep.subr.bf16.mxu0 0
    %154 = vmatpush2.bf16.msra.mxu0 0
    %155 = vmatprep.subr.bf16.mxu0 0
    %156 = vmatpush2.bf16.msra.mxu0 0
    %157 = vmatprep.subr.bf16.mxu0 0
    %158 = vmatpush2.bf16.msra.mxu0 0
    %159 = vmatprep.mubr.bf16.mxu0 0
    %160 = vmatmul.mubr.bf16.gmra.mxu0 %v116
    %v161 = vpop.f32.mrf.mxu0
    %v162 = vadd.f32 %v51, %v161
    %v163 = vpop.f32.mrf.mxu0
    %v164 = vpop.f32.mrf.mxu0
    %v165 = vadd.f32 %v56, %v164
    %v166 = vpop.f32.mrf.mxu0
    %167 = vmatprep.mubr.bf16.mxu0 0
    %168 = vmatmul.mubr.bf16.gmra.mxu0 %v119
    %v169 = vpop.f32.mrf.mxu0
    %v170 = vadd.f32 %v61, %v169
    %v171 = vpop.f32.mrf.mxu0
    %v172 = vpop.f32.mrf.mxu0
    %v173 = vadd.f32 %v66, %v172
    %v174 = vpop.f32.mrf.mxu0
    %175 = vmatprep.mubr.bf16.mxu0 0
    %176 = vmatmul.mubr.bf16.gmra.mxu0 %v122
    %v177 = vpop.f32.mrf.mxu0
    %v178 = vadd.f32 %v71, %v177
    %v179 = vpop.f32.mrf.mxu0
    %v180 = vpop.f32.mrf.mxu0
    %v181 = vadd.f32 %v76, %v180
    %v182 = vpop.f32.mrf.mxu0
    %183 = vmatprep.mubr.bf16.mxu0 0
    %184 = vmatmul.mubr.bf16.gmra.mxu0 %v125
    %v185 = vpop.f32.mrf.mxu0
    %v186 = vadd.f32 %v81, %v185
    %v187 = vpop.f32.mrf.mxu0
    %v188 = vpop.f32.mrf.mxu0
    %v189 = vadd.f32 %v86, %v188
    %v190 = vpop.f32.mrf.mxu0
    %191 = vdwg.mxu0
    %v192 = vmax.f32 %v162, 0.0
    %v193 = vmax.f32 %v165, 0.0
    %v194 = vmax.f32 %v170, 0.0
    %v195 = vmax.f32 %v173, 0.0
    %v196 = vmax.f32 %v178, 0.0
    %v197 = vmax.f32 %v181, 0.0
    %v198 = vmax.f32 %v186, 0.0
    %v199 = vmax.f32 %v189, 0.0
    %v200 = vld [vmem:[%s3] sm:$0xf]
    %v201 = vld [vmem:[%s3 + $0x4] sm:$0xf]
    %v202 = vld [vmem:[%s3 + $0x8] sm:$0xf]
    %v203 = vld [vmem:[%s3 + $0xc] sm:$0xf]
    %v204 = vpack.c.bf16 %v193, %v192
    %v205 = vpack.c.bf16 %v195, %v194
    %v206 = vpack.c.bf16 %v197, %v196
    %v207 = vpack.c.bf16 %v199, %v198
    %v208 = vld [vmem:[%s4] sm:$0xff]
    %v209 = vld [vmem:[%s4 + $0x8] sm:$0xff]
    %v210 = vld [vmem:[%s4 + $0x10] sm:$0xff]
    %v211 = vld [vmem:[%s4 + $0x18] sm:$0xff]
    %213 = vset.pattern.permute.xlu0 0
    %214 = vperm.xlu0 %213, %v208
    %v215 = vpop.permute.xlu0 %214
    %218 = vset.pattern.permute.xlu0 0
    %219 = vperm.xlu0 %218, %v209
    %v220 = vpop.permute.xlu0 %219
    %223 = vset.pattern.permute.xlu0 0
    %224 = vperm.xlu0 %223, %v210
    %v225 = vpop.permute.xlu0 %224
    %228 = vset.pattern.permute.xlu0 0
    %229 = vperm.xlu0 %228, %v211
    %v230 = vpop.permute.xlu0 %229
    %v236 = vunpack.c.l.b16 %v200
    %v237 = vunpack.c.l.b16 %v201
    %v238 = vunpack.c.l.b16 %v202
    %v239 = vunpack.c.l.b16 %v203
    %v240 = vpack.c.b16 %v237, %v236
    %v241 = vpack.c.b16 %v239, %v238
    %vm242 = vcmask 523264
    %v244 = vsel %vm242, %v240, 0
    %v247 = vsel %vm242, %v241, 0
    %249 = vmatprep.subr.bf16.mxu0 0
    %250 = vmatpush1.bf16.msra.mxu0 0
    %251 = vmatprep.subr.bf16.mxu0 0
    %252 = vmatpush1.bf16.msra.mxu0 0
    %253 = vmatprep.subr.bf16.mxu0 0
    %254 = vmatpush1.bf16.msra.mxu0 0
    %255 = vmatprep.subr.bf16.mxu0 0
    %256 = vmatpush1.bf16.msra.mxu0 0
    %257 = vmatprep.subr.bf16.mxu0 0
    %258 = vmatpush1.bf16.msra.mxu0 %v207
    %259 = vmatprep.subr.bf16.mxu0 0
    %260 = vmatpush1.bf16.msra.mxu0 %v206
    %261 = vmatprep.subr.bf16.mxu0 0
    %262 = vmatpush1.bf16.msra.mxu0 %v205
    %263 = vmatprep.subr.bf16.mxu0 0
    %264 = vmatpush1.bf16.msra.mxu0 %v204
    %265 = vmatprep.subr.bf16.mxu0 0
    %266 = vmatpush2.bf16.msra.mxu0 0
    %267 = vmatprep.subr.bf16.mxu0 0
    %268 = vmatpush2.bf16.msra.mxu0 0
    %269 = vmatprep.subr.bf16.mxu0 0
    %270 = vmatpush2.bf16.msra.mxu0 0
    %271 = vmatprep.subr.bf16.mxu0 0
    %272 = vmatpush2.bf16.msra.mxu0 0
    %273 = vmatprep.subr.bf16.mxu0 0
    %274 = vmatpush2.bf16.msra.mxu0 0
    %275 = vmatprep.subr.bf16.mxu0 0
    %276 = vmatpush2.bf16.msra.mxu0 0
    %277 = vmatprep.subr.bf16.mxu0 0
    %278 = vmatpush2.bf16.msra.mxu0 0
    %279 = vmatprep.subr.bf16.mxu0 0
    %280 = vmatpush2.bf16.msra.mxu0 0
    %281 = vmatprep.mubr.bf16.mxu0 0
    %282 = vmatmul.mubr.bf16.gmra.mxu0 %v244
    %v283 = vpop.f32.mrf.mxu0
    %v284 = vadd.f32 %v215, %v283
    %v285 = vpop.f32.mrf.mxu0
    %v286 = vpop.f32.mrf.mxu0
    %v287 = vadd.f32 %v220, %v286
    %v288 = vpop.f32.mrf.mxu0
    %289 = vmatprep.mubr.bf16.mxu0 0
    %290 = vmatmul.mubr.bf16.gmra.mxu0 %v247
    %v291 = vpop.f32.mrf.mxu0
    %v292 = vadd.f32 %v225, %v291
    %v293 = vpop.f32.mrf.mxu0
    %v294 = vpop.f32.mrf.mxu0
    %v295 = vadd.f32 %v230, %v294
    %v296 = vpop.f32.mrf.mxu0
    %297 = vdwg.mxu0
    %v298 = vmax.f32 %v284, 0.0
    %v299 = vmax.f32 %v287, 0.0
    %v300 = vmax.f32 %v292, 0.0
    %v301 = vmax.f32 %v295, 0.0
    %v302 = vld [vmem:[%s5] sm:$0xff]
    %v303 = vld [vmem:[%s5 + $0x8] sm:$0xff]
    %v304 = vld [vmem:[%s5 + $0x10] sm:$0xff]
    %v305 = vld [vmem:[%s5 + $0x18] sm:$0xff]
    %307 = vset.pattern.permute.xlu0 0
    %308 = vperm.xlu0 %307, %v302
    %v309 = vpop.permute.xlu0 %308
    %312 = vset.pattern.permute.xlu0 0
    %313 = vperm.xlu0 %312, %v303
    %v314 = vpop.permute.xlu0 %313
    %317 = vset.pattern.permute.xlu0 0
    %318 = vperm.xlu0 %317, %v304
    %v319 = vpop.permute.xlu0 %318
    %322 = vset.pattern.permute.xlu0 0
    %323 = vperm.xlu0 %322, %v305
    %v324 = vpop.permute.xlu0 %323
    %v326 = vmul.f32 %v298, %v309
    %v327 = vmul.f32 %v299, %v314
    %v328 = vmul.f32 %v300, %v319
    %v329 = vmul.f32 %v301, %v324
    %vm330 = vcmask 80896
    %v331 = vsel %vm330, %v326, 0.0
    %v332 = vsel %vm330, %v327, 0.0
    %v333 = vadd.f32 %v331, %v332
    %v334 = vsel %vm330, %v328, 0.0
    %v335 = vadd.f32 %v333, %v334
    %v336 = vsel %vm330, %v329, 0.0
    %v337 = vadd.f32 %v335, %v336
    %v338 = vrot.slane %v337, 4
    %v339 = vadd.f32 %v337, %v338
    %v340 = vrot.slane %v339, 2
    %v341 = vadd.f32 %v339, %v340
    %v342 = vrot.slane %v341, 1
    %v343 = vadd.f32 %v341, %v342
    %v344 = vld [vmem:[#allocation2] sm:$0x1]
    %346 = vset.pattern.permute.xlu0 0
    %347 = vperm.xlu0 %346, %v344
    %v348 = vpop.permute.xlu0 %347
    %v350 = vlaneseq
    %v351 = vshrl.u32 %v350, 7
    %v352 = vsub.s32 0, %v351
    %v353 = vrot.slane %v348, %v352
    %v354 = vadd.f32 %v343, %v353
    %vm355 = vcmask 73728
    %356 = vst.msk [vmem:[#allocation3] sm:$0x1] %vm355, %v354
    // Predicated region
    $region30: #{tpu_custom_call.1} parent=1 // pred_check
      _
    $region31: #{tpu_custom_call.1} parent=1 // pred_check_branch
      %358 = sbr.rel (0) target = $region33
    $region32: #{tpu_custom_call.1} parent=1 // pred_region
      %s360 = ssub.s32 16, 16
      %361 = vsyncadd [#allocation4], %s360
      %s363 = sshll.u32 [#allocation3], 4
      %s364 = int_to_ptr.vmem [resolvable:$true] %s363
      %366 = dma.vmem_to_hbm [thread:$0]  %s364, 16, %s7, [#allocation4]
    $region33: #{tpu_custom_call.1} parent=1 // pred_fallthru
      _
    // Predicated region
    $region34: #{tpu_custom_call.1} parent=1 // pred_check
      _
    $region35: #{tpu_custom_call.1} parent=1 // pred_check_branch
      %368 = sbr.rel (0) target = $region37
    $region36: #{tpu_custom_call.1} parent=1 // pred_region
      %369 = dma.done [#allocation4], 16
    $region37: #{tpu_custom_call.1} parent=1 // pred_fallthru
      _
    %370 = vsyncpa [#allocation4], 1

</llo_original>
